<compile_context>
chip_gen: v5e
topology: v5e:2x2
jax: 0.10.0
libtpu: 0.0.40
codegen_flags: <defaults>
</compile_context>

<pallas_src>
import functools

import jax
import jax.numpy as jnp
from jax.experimental import pallas as pl
from jax.experimental.pallas import tpu as pltpu


def _residual_ln_kernel(x_ref, att_ref, a2_ref, b2_ref, o_ref, *, eps, feat):
    # x_ref, att_ref, o_ref : (TM, H) tiles; a2_ref, b2_ref : (1, H)
    att = att_ref[...].astype(jnp.float32)

    # One-pass statistics: sum and sum-of-squares are independent reductions,
    # so the two cross-lane reductions can issue back-to-back on the XLU.
    s1 = jnp.sum(att, axis=-1, keepdims=True)                    # (TM, 1)
    s2 = jnp.sum(att * att, axis=-1, keepdims=True)              # (TM, 1)
    mean = s1 * (1.0 / feat)
    # unbiased variance (torch .std() default): divide by (H - 1); clamp >= 0
    # to guard against rounding in the one-pass formula.
    var = jnp.maximum(s2 - s1 * mean, 0.0) * (1.0 / max(feat - 1.0, 1.0))
    std = jnp.sqrt(var)                                          # (TM, 1)

    # Reciprocal on the tiny (TM, 1) column + one (TM, H) multiply instead of a
    # full-tile (TM, H) divide.  approx=False keeps exact f32 semantics.
    inv = pl.reciprocal(std + eps, approx=False)                 # (TM, 1)

    a2 = a2_ref[...].astype(jnp.float32)                         # (1, H)
    b2 = b2_ref[...].astype(jnp.float32)                         # (1, H)

    normed = a2 * ((att - mean) * inv) + b2
    # Dropout(eval) == identity.  Fused residual add + store.
    o_ref[...] = (x_ref[...].astype(jnp.float32) + normed).astype(o_ref.dtype)


def _vmem_capacity_bytes():
    """Physical VMEM per TensorCore; falls back to a conservative 64 MiB."""
    try:
        return int(pltpu.get_tpu_info().vmem_capacity_bytes)
    except Exception:
        return 64 * 1024 * 1024


def _sublane_multiple(itemsize):
    # Sub-32-bit dtypes pack along sublanes: bf16 vreg is [16,128], int8/fp8 [32,128].
    if itemsize >= 4:
        return 8
    if itemsize == 2:
        return 16
    return 32


def _per_row_bytes(H, itemsize):
    # 3 streams (x, att, out) x 2 pipeline buffers  +  ~3 live f32 (TM,H)
    # temporaries inside the kernel (att cast / diff / normed chains).
    return 6 * H * itemsize + 12 * H


def _pick_row_tile(R, H, itemsize, row_tile, vmem_budget_bytes):
    """Pick a row tile: multiple of the dtype's sublane packing, VMEM-budgeted."""
    sub = _sublane_multiple(itemsize)
    if row_tile is not None:
        tm = min(int(row_tile), R)
        if tm < R:
            tm = max(sub, (tm // sub) * sub)  # (8,128) constraint on partial blocks
        return tm
    tm = vmem_budget_bytes // max(_per_row_bytes(H, itemsize), 1)
    tm = max(sub, (int(tm) // sub) * sub)
    if tm >= R:
        return R                              # full-array block (always legal)
    return tm


def residual_connection(x, att_features, a_2, b_2, eps=1e-6, row_tile=None):
    """x, att_features: [B, S, H]; a_2, b_2: [H]. Returns [B, S, H]."""
    B, S, H = x.shape
    R = B * S
    x2 = x.reshape(R, H)
    att2 = att_features.reshape(R, H)
    a2 = a_2.reshape(1, H)
    b2 = b_2.reshape(1, H)

    itemsize = jnp.dtype(x.dtype).itemsize
    vmem_cap = _vmem_capacity_bytes()
    # ~5/8 of physical VMEM, capped at 40 MiB so v7x (64 MiB/TC) keeps headroom
    # for compiler-internal scratch; v5e/v6e (128 MiB) also land at 40 MiB.
    budget = min((vmem_cap * 5) // 8, 40 * 1024 * 1024)

    tm = _pick_row_tile(R, H, itemsize, row_tile, budget)
    grid = (pl.cdiv(R, tm),)

    # Footprint-derived VMEM limit (pipeline buffers + f32 temporaries + params),
    # with headroom, clamped to what the chip actually has.
    footprint = tm * _per_row_bytes(H, itemsize) + 4 * H * itemsize
    vmem_limit = max(16 * 1024 * 1024, min(vmem_cap, footprint + 8 * 1024 * 1024))

    kernel = functools.partial(_residual_ln_kernel, eps=float(eps), feat=float(H))

    out = pl.pallas_call(
        kernel,
        out_shape=jax.ShapeDtypeStruct((R, H), x.dtype),
        grid_spec=pltpu.PrefetchScalarGridSpec(
            num_scalar_prefetch=0,
            grid=grid,
            in_specs=[
                pl.BlockSpec((tm, H), lambda i: (i, 0)),   # x rows
                pl.BlockSpec((tm, H), lambda i: (i, 0)),   # att_features rows
                pl.BlockSpec((1, H), lambda i: (0, 0)),    # a_2 (broadcast)
                pl.BlockSpec((1, H), lambda i: (0, 0)),    # b_2 (broadcast)
            ],
            out_specs=pl.BlockSpec((tm, H), lambda i: (i, 0)),
        ),
        compiler_params=pltpu.CompilerParams(
            dimension_semantics=("parallel",),
            vmem_limit_bytes=int(vmem_limit),
        ),
    )(x2, att2, a2, b2)

    return out.reshape(B, S, H)


def _reference(x, att, a_2, b_2, eps=1e-6):
    mean = jnp.mean(att, axis=-1, keepdims=True)
    # unbiased std to match torch.Tensor.std default
    var = jnp.sum((att - mean) ** 2, axis=-1, keepdims=True) / (att.shape[-1] - 1)
    std = jnp.sqrt(var)
    return x + (a_2 * (att - mean) / (std + eps) + b_2)


if __name__ == "__main__":
    key = jax.random.PRNGKey(0)
    B, S, H = 2, 8, 32   # _size = H = 32 (small-H demo: lane-masked but correct)
    k1, k2 = jax.random.split(key)
    x = jax.random.normal(k1, (B, S, H), dtype=jnp.float32)
    att = jax.random.normal(k2, (B, S, H), dtype=jnp.float32)

    # deterministic parameter init: LayerNorm a_2 = ones, b_2 = zeros
    a_2 = jnp.ones((H,), dtype=jnp.float32)
    b_2 = jnp.zeros((H,), dtype=jnp.float32)

    out = residual_connection(x, att, a_2, b_2)
    out = jax.block_until_ready(out)

    ref = _reference(x, att, a_2, b_2)
    assert out.shape == (B, S, H)
    assert jnp.allclose(out, ref, atol=1e-5, rtol=1e-5), "mismatch vs reference"

    # exercise the multi-step (tiled) grid path + the default tile picker on a
    # larger, lane-dense (H multiple of 128) problem
    Bb, Sb, Hb = 4, 512, 256
    kk1, kk2 = jax.random.split(jax.random.PRNGKey(1))
    xb = jax.random.normal(kk1, (Bb, Sb, Hb), dtype=jnp.float32)
    attb = jax.random.normal(kk2, (Bb, Sb, Hb), dtype=jnp.float32)
    a2b = jnp.ones((Hb,), dtype=jnp.float32)
    b2b = jnp.zeros((Hb,), dtype=jnp.float32)
    refb = _reference(xb, attb, a2b, b2b)

    outb = jax.block_until_ready(residual_connection(xb, attb, a2b, b2b, row_tile=512))
    assert jnp.allclose(outb, refb, atol=1e-5, rtol=1e-5), "mismatch (tiled) vs reference"

    outb2 = jax.block_until_ready(residual_connection(xb, attb, a2b, b2b))
    assert jnp.allclose(outb2, refb, atol=1e-5, rtol=1e-5), "mismatch (auto-tile) vs reference"

    print("KERNEL_OK")
</pallas_src>

<mosaic_0001>
module attributes {stable_mosaic.version = 11 : i64} {
  func.func @_residual_ln_kernel(%arg0: i32, %arg1: memref<16x32xf32, #tpu.memory_space<vmem>>, %arg2: memref<16x32xf32, #tpu.memory_space<vmem>>, %arg3: memref<1x32xf32, #tpu.memory_space<vmem>>, %arg4: memref<1x32xf32, #tpu.memory_space<vmem>>, %arg5: memref<16x32xf32, #tpu.memory_space<vmem>>) attributes {dimension_semantics = [#tpu.dimension_semantics<parallel>], iteration_bounds = array<i64: 1>, scalar_prefetch = 0 : i64, scratch_operands = 0 : i64, tpu.core_type = #tpu.core_type<tc>, window_params = [{transform_indices = @transform_0, window_bounds = array<i64: 16, 32>}, {transform_indices = @transform_1, window_bounds = array<i64: 16, 32>}, {pipeline_mode = #tpu.pipeline_mode<synchronous>, transform_indices = @transform_2, window_bounds = array<i64: 1, 32>}, {pipeline_mode = #tpu.pipeline_mode<synchronous>, transform_indices = @transform_3, window_bounds = array<i64: 1, 32>}, {transform_indices = @transform_4, window_bounds = array<i64: 16, 32>}]} {
    %c0 = arith.constant 0 : index
    %c0_0 = arith.constant 0 : index
    %0 = vector.load %arg2[%c0, %c0_0] : memref<16x32xf32, #tpu.memory_space<vmem>>, vector<16x32xf32>
    %cst = arith.constant dense<0.000000e+00> : vector<16xf32>
    %1 = vector.multi_reduction <add>, %0, %cst [1] : vector<16x32xf32> to vector<16xf32>
    %2 = vector.shape_cast %1 : vector<16xf32> to vector<16x1xf32>
    %3 = arith.mulf %0, %0 : vector<16x32xf32>
    %cst_1 = arith.constant dense<0.000000e+00> : vector<16xf32>
    %4 = vector.multi_reduction <add>, %3, %cst_1 [1] : vector<16x32xf32> to vector<16xf32>
    %5 = vector.shape_cast %4 : vector<16xf32> to vector<16x1xf32>
    %cst_2 = arith.constant 3.125000e-02 : f32
    %6 = vector.broadcast %cst_2 : f32 to vector<16x1xf32>
    %7 = arith.mulf %2, %6 : vector<16x1xf32>
    %8 = arith.mulf %2, %7 : vector<16x1xf32>
    %9 = arith.subf %5, %8 : vector<16x1xf32>
    %cst_3 = arith.constant 0.000000e+00 : f32
    %10 = vector.broadcast %cst_3 : f32 to vector<16x1xf32>
    %11 = arith.maximumf %9, %10 : vector<16x1xf32>
    %cst_4 = arith.constant 0.0322580636 : f32
    %12 = vector.broadcast %cst_4 : f32 to vector<16x1xf32>
    %13 = arith.mulf %11, %12 : vector<16x1xf32>
    %14 = math.sqrt %13 : vector<16x1xf32>
    %cst_5 = arith.constant 9.99999997E-7 : f32
    %15 = vector.broadcast %cst_5 : f32 to vector<16x1xf32>
    %16 = arith.addf %14, %15 : vector<16x1xf32>
    %17 = tpu.reciprocal %16 : vector<16x1xf32> -> vector<16x1xf32>
    %c0_6 = arith.constant 0 : index
    %c0_7 = arith.constant 0 : index
    %18 = vector.load %arg3[%c0_6, %c0_7] : memref<1x32xf32, #tpu.memory_space<vmem>>, vector<1x32xf32>
    %c0_8 = arith.constant 0 : index
    %c0_9 = arith.constant 0 : index
    %19 = vector.load %arg4[%c0_8, %c0_9] : memref<1x32xf32, #tpu.memory_space<vmem>>, vector<1x32xf32>
    %20 = vector.broadcast %7 : vector<16x1xf32> to vector<16x32xf32>
    %21 = arith.subf %0, %20 : vector<16x32xf32>
    %22 = vector.broadcast %17 : vector<16x1xf32> to vector<16x32xf32>
    %23 = arith.mulf %21, %22 : vector<16x32xf32>
    %24 = vector.broadcast %18 : vector<1x32xf32> to vector<16x32xf32>
    %25 = arith.mulf %24, %23 : vector<16x32xf32>
    %26 = vector.broadcast %19 : vector<1x32xf32> to vector<16x32xf32>
    %27 = arith.addf %25, %26 : vector<16x32xf32>
    %c0_10 = arith.constant 0 : index
    %c0_11 = arith.constant 0 : index
    %28 = vector.load %arg1[%c0_10, %c0_11] : memref<16x32xf32, #tpu.memory_space<vmem>>, vector<16x32xf32>
    %29 = arith.addf %28, %27 : vector<16x32xf32>
    %c0_12 = arith.constant 0 : index
    %c0_13 = arith.constant 0 : index
    %30 = vector.load %arg5[%c0_12, %c0_13] : memref<16x32xf32, #tpu.memory_space<vmem>>, vector<16x32xf32>
    tpu.vector_store %arg5[%c0_12, %c0_13], %29 {strides = array<i32>} : memref<16x32xf32, #tpu.memory_space<vmem>>, vector<16x32xf32>,
    return
  }
  func.func @transform_0(%arg0: i32) -> (i32, i32) {
    %c0_i32 = arith.constant 0 : i32
    %c0_i32_0 = arith.constant 0 : i32
    return %arg0, %c0_i32 : i32, i32
  }
  func.func @transform_1(%arg0: i32) -> (i32, i32) {
    %c0_i32 = arith.constant 0 : i32
    %c0_i32_0 = arith.constant 0 : i32
    return %arg0, %c0_i32 : i32, i32
  }
  func.func @transform_2(%arg0: i32) -> (i32, i32) {
    %c0_i32 = arith.constant 0 : i32
    %c0_i32_0 = arith.constant 0 : i32
    %c0_i32_1 = arith.constant 0 : i32
    return %c0_i32, %c0_i32_0 : i32, i32
  }
  func.func @transform_3(%arg0: i32) -> (i32, i32) {
    %c0_i32 = arith.constant 0 : i32
    %c0_i32_0 = arith.constant 0 : i32
    %c0_i32_1 = arith.constant 0 : i32
    return %c0_i32, %c0_i32_0 : i32, i32
  }
  func.func @transform_4(%arg0: i32) -> (i32, i32) {
    %c0_i32 = arith.constant 0 : i32
    %c0_i32_0 = arith.constant 0 : i32
    return %arg0, %c0_i32 : i32, i32
  }
}

</mosaic_0001>

<llo_original>
// kernel: tpu_custom_call.1
$region0: #{tpu_custom_call.1}
  #allocation0 [shape = 'u32[]', space=smem, size = 0x4, offset = 0x4, fixed_abs, tag = 'smem constant byte address 0x4 - core index']
  #allocation1 [shape = 'u32[72,128]{1,0:T(1,128)}', space=vmem, size = 0x9000, scoped, tag = 'internal scratch']
  %s0 = inlined_call_operand.hbm [shape: f32[16,32], index: 0, kind: input, shape index: {}]
  %s1 = inlined_call_operand.hbm [shape: f32[16,32], index: 1, kind: input, shape index: {}]
  %s2 = inlined_call_operand.vmem [shape: f32[1,32], index: 2, kind: input, shape index: {}]
  %s3 = inlined_call_operand.vmem [shape: f32[1,32], index: 3, kind: input, shape index: {}]
  %s4 = inlined_call_operand.hbm [shape: f32[16,32], index: 4, kind: output, shape index: {}]
  %s5 = sld [smem:[#allocation0]]
  $region34: #{tpu_custom_call.1} parent=0
    _
  %s7 = ssub.s32 1, %s5
  %s8 = scalar_select 0, %s7, %s5
  $region1: #{tpu_custom_call.1} parent=0
    #allocation2 [shape = 'u8[8192]{0}', space=vmem, size = 0x2000, scoped, tag = 'input window, operand 0, single buffered']
    #allocation3 [shape = 's32[1]{0}', space=sflag, size = 0x4, scoped, tag = 'scoped memory for tpu_custom_call.1']
    #allocation4 [shape = 's32[1]{0}', space=sflag, size = 0x4, scoped, tag = 'scoped memory for tpu_custom_call.1']
    #allocation5 [shape = 'u8[8192]{0}', space=vmem, size = 0x2000, scoped, tag = 'input window, operand 1, single buffered']
    #allocation6 [shape = 's32[1]{0}', space=sflag, size = 0x4, scoped, tag = 'scoped memory for tpu_custom_call.1']
    #allocation7 [shape = 'u8[8192]{0}', space=vmem, size = 0x2000, scoped, tag = 'output window, operand 0, single buffered']
    %9 = vsyncpa [#allocation3], 0
    %10 = vsyncpa [#allocation6], 0
    %11 = vsyncpa [#allocation4], 0
    // Predicated region
    $region2: #{tpu_custom_call.1} parent=1 // pred_check
      _
    $region3: #{tpu_custom_call.1} parent=1 // pred_check_branch
      %13 = sbr.rel (0) target = $region5
    $region4: #{tpu_custom_call.1} parent=1 // pred_region
      %15 = vsyncadd [#allocation3], 0
      %s16 = sshll.u32 %s0, 4
      %s17 = int_to_ptr.hbm [resolvable:$true] %s16
      %s18 = sshll.u32 [#allocation2], 4
      %s19 = int_to_ptr.vmem [resolvable:$true] %s18
      %24 = dma.hbm_to_vmem [thread:$0]  %s17, 256, %s19, [#allocation3], 128, 128, 8
    $region5: #{tpu_custom_call.1} parent=1 // pred_fallthru
      _
    // Predicated region
    $region6: #{tpu_custom_call.1} parent=1 // pred_check
      _
    $region7: #{tpu_custom_call.1} parent=1 // pred_check_branch
      %26 = sbr.rel (0) target = $region9
    $region8: #{tpu_custom_call.1} parent=1 // pred_region
      %28 = vsyncadd [#allocation6], 0
      %s29 = sshll.u32 %s1, 4
      %s30 = int_to_ptr.hbm [resolvable:$true] %s29
      %s31 = sshll.u32 [#allocation5], 4
      %s32 = int_to_ptr.vmem [resolvable:$true] %s31
      %37 = dma.hbm_to_vmem [thread:$0]  %s30, 256, %s32, [#allocation6], 128, 128, 8
    $region9: #{tpu_custom_call.1} parent=1 // pred_fallthru
      _
    // Predicated region
    $region10: #{tpu_custom_call.1} parent=1 // pred_check
      _
    $region11: #{tpu_custom_call.1} parent=1 // pred_check_branch
      %39 = sbr.rel (0) target = $region13
    $region12: #{tpu_custom_call.1} parent=1 // pred_region
      _
    $region13: #{tpu_custom_call.1} parent=1 // pred_fallthru
      _
    // Predicated region
    $region14: #{tpu_custom_call.1} parent=1 // pred_check
      _
    $region15: #{tpu_custom_call.1} parent=1 // pred_check_branch
      %41 = sbr.rel (0) target = $region17
    $region16: #{tpu_custom_call.1} parent=1 // pred_region
      _
    $region17: #{tpu_custom_call.1} parent=1 // pred_fallthru
      _
    // Predicated region
    $region18: #{tpu_custom_call.1} parent=1 // pred_check
      _
    $region19: #{tpu_custom_call.1} parent=1 // pred_check_branch
      %43 = sbr.rel (0) target = $region21
    $region20: #{tpu_custom_call.1} parent=1 // pred_region
      %45 = dma.done [#allocation3], 256
    $region21: #{tpu_custom_call.1} parent=1 // pred_fallthru
      _
    // Predicated region
    $region22: #{tpu_custom_call.1} parent=1 // pred_check
      _
    $region23: #{tpu_custom_call.1} parent=1 // pred_check_branch
      %47 = sbr.rel (0) target = $region25
    $region24: #{tpu_custom_call.1} parent=1 // pred_region
      %49 = dma.done [#allocation6], 256
    $region25: #{tpu_custom_call.1} parent=1 // pred_fallthru
      _
    %v50 = vld [vmem:[#allocation5] sm:$0xff]
    %v51 = vld [vmem:[#allocation5 + $0x8] sm:$0xff]
    %vm52 = vcmask 261120
    %v53 = vsel %vm52, %v50, 0.0
    %54 = vadd.xlane.f32.xlu0 %v53
    %v55 = vpop.xlane.xlu0 %54
    %v56 = vsel %vm52, %v51, 0.0
    %57 = vadd.xlane.f32.xlu0 %v56
    %v58 = vpop.xlane.xlu0 %57
    %v59 = vmul.f32 %v50, %v50
    %v60 = vmul.f32 %v51, %v51
    %v61 = vsel %vm52, %v59, 0.0
    %62 = vadd.xlane.f32.xlu0 %v61
    %v63 = vpop.xlane.xlu0 %62
    %v64 = vsel %vm52, %v60, 0.0
    %65 = vadd.xlane.f32.xlu0 %v64
    %v66 = vpop.xlane.xlu0 %65
    %v67 = vmul.f32 %v55, 0.03125
    %v68 = vmul.f32 %v58, 0.03125
    %v69 = vmul.f32 %v55, %v67
    %v70 = vmul.f32 %v58, %v68
    %v71 = vsub.f32 %v63, %v69
    %v72 = vsub.f32 %v66, %v70
    %v73 = vmax.f32 %v71, 0.0
    %v74 = vmax.f32 %v72, 0.0
    %v75 = vmul.f32 %v73, 0.032258064
    %v76 = vmul.f32 %v74, 0.032258064
    %v77 = vrsqrt.pop %v75
    %v78 = vmul.f32 %v77, %v75
    %v79 = vmul.f32 %v78, %v77
    %v80 = vmul.f32 0.5, %v79
    %v81 = vsub.f32 1.5, %v80
    %v82 = vmul.f32 %v77, %v81
    %v83 = vmul.f32 %v75, %v82
    %vm84 = vcmp.eq.f32.partialorder %v75, inf
    %v85 = vsel %vm84, %v75, %v83
    %vm86 = vcmp.eq.f32.partialorder %v75, 0.0
    %v87 = vand.u32 %v75, 2147483648
    %v88 = vsel %vm86, %v87, %v85
    %v89 = vrsqrt.pop %v76
    %v90 = vmul.f32 %v89, %v76
    %v91 = vmul.f32 %v90, %v89
    %v92 = vmul.f32 0.5, %v91
    %v93 = vsub.f32 1.5, %v92
    %v94 = vmul.f32 %v89, %v93
    %v95 = vmul.f32 %v76, %v94
    %vm96 = vcmp.eq.f32.partialorder %v76, inf
    %v97 = vsel %vm96, %v76, %v95
    %vm98 = vcmp.eq.f32.partialorder %v76, 0.0
    %v99 = vand.u32 %v76, 2147483648
    %v100 = vsel %vm98, %v99, %v97
    %v101 = vadd.f32 %v88, 1e-06
    %v102 = vadd.f32 %v100, 1e-06
    %v103 = vrcp.pop %v101
    %v104 = vmul.f32 %v101, %v103
    %v105 = vsub.f32 1.0, %v104
    %v106 = vmul.f32 %v103, %v105
    %v107 = vadd.f32 %v103, %v106
    %vm108 = vweird.f32 %v101
    %vm109 = vweird.f32 %v103
    %vm110 = vmor %vm108, %vm109
    %v111 = vsel %vm110, %v103, %v107
    %v112 = vand.u32 2147483647, %v101
    %vm113 = vcmp.eq.f32.partialorder %v112, 8.507059e+37
    %v114 = vand.u32 %v101, 2147483648
    %v115 = vor.u32 1.1754944e-38, %v114
    %v116 = vsel %vm113, %v115, %v111
    %v117 = vrcp.pop %v102
    %v118 = vmul.f32 %v102, %v117
    %v119 = vsub.f32 1.0, %v118
    %v120 = vmul.f32 %v117, %v119
    %v121 = vadd.f32 %v117, %v120
    %vm122 = vweird.f32 %v102
    %vm123 = vweird.f32 %v117
    %vm124 = vmor %vm122, %vm123
    %v125 = vsel %vm124, %v117, %v121
    %v126 = vand.u32 2147483647, %v102
    %vm127 = vcmp.eq.f32.partialorder %v126, 8.507059e+37
    %v128 = vand.u32 %v102, 2147483648
    %v129 = vor.u32 1.1754944e-38, %v128
    %v130 = vsel %vm127, %v129, %v125
    %v131 = vld [vmem:[%s2] sm:$0x1]
    %v132 = vld [vmem:[%s3] sm:$0x1]
    %v133 = vsub.f32 %v50, %v67
    %v134 = vsub.f32 %v51, %v68
    %v135 = vmul.f32 %v133, %v116
    %v136 = vmul.f32 %v134, %v130
    %v138 = vperm.slane %v131, 0
    %v140 = vmul.f32 %v138, %v135
    %v141 = vmul.f32 %v138, %v136
    %v143 = vperm.slane %v132, 0
    %v145 = vadd.f32 %v140, %v143
    %v146 = vadd.f32 %v141, %v143
    %v147 = vld [vmem:[#allocation2] sm:$0xff]
    %v148 = vld [vmem:[#allocation2 + $0x8] sm:$0xff]
    %v149 = vadd.f32 %v147, %v145
    %v150 = vadd.f32 %v148, %v146
    %151 = vst.msk [vmem:[#allocation7] sm:$0xff] %vm52, %v149
    %152 = vst.msk [vmem:[#allocation7 + $0x8] sm:$0xff] %vm52, %v150
    // Predicated region
    $region26: #{tpu_custom_call.1} parent=1 // pred_check
      _
    $region27: #{tpu_custom_call.1} parent=1 // pred_check_branch
      %154 = sbr.rel (0) target = $region29
    $region28: #{tpu_custom_call.1} parent=1 // pred_region
      %156 = vsyncadd [#allocation4], 0
      %s157 = sshll.u32 [#allocation7], 4
      %s158 = int_to_ptr.vmem [resolvable:$true] %s157
      %s159 = sshll.u32 %s4, 4
      %s160 = int_to_ptr.hbm [resolvable:$true] %s159
      %165 = dma.vmem_to_hbm [thread:$0]  %s158, 256, %s160, [#allocation4], 128, 128, 8
    $region29: #{tpu_custom_call.1} parent=1 // pred_fallthru
      _
    // Predicated region
    $region30: #{tpu_custom_call.1} parent=1 // pred_check
      _
    $region31: #{tpu_custom_call.1} parent=1 // pred_check_branch
      %167 = sbr.rel (0) target = $region33
    $region32: #{tpu_custom_call.1} parent=1 // pred_region
      %169 = dma.done [#allocation4], 256
    $region33: #{tpu_custom_call.1} parent=1 // pred_fallthru
      _
    %170 = vsyncpa [#allocation3], 1
    %171 = vsyncpa [#allocation6], 1
    %172 = vsyncpa [#allocation4], 1

</llo_original>
